<compile_context>
chip_gen: v7x
topology: tpu7x:2x2x1
jax: 0.10.0
libtpu: 0.0.40
codegen_flags: <defaults>
</compile_context>

<pallas_src>
import jax
import jax.numpy as jnp
from jax.experimental import pallas as pl
from jax.experimental.pallas import tpu as pltpu


def mlp_kernel(xT_ref, w1_ref, b1_ref, w2_ref, b2_ref, w3_ref, b3_ref, yT_ref):
    # All activations keep the batch on the lane axis: (features, TB).
    # fc1 + ReLU: (h1, in) @ (in, TB) -> (h1, TB)
    h = jnp.dot(w1_ref[...], xT_ref[...], preferred_element_type=jnp.float32)
    h = jnp.maximum(h + b1_ref[...], 0.0)
    # fc2 + ReLU: (h2, h1) @ (h1, TB) -> (h2, TB)
    h = jnp.dot(w2_ref[...], h.astype(w2_ref.dtype),
                preferred_element_type=jnp.float32)
    h = jnp.maximum(h + b2_ref[...], 0.0)
    # out: (out, h2) @ (h2, TB) -> (out, TB); lane-dense store (TB on lanes).
    y = jnp.dot(w3_ref[...], h.astype(w3_ref.dtype),
                preferred_element_type=jnp.float32)
    yT_ref[...] = (y + b3_ref[...]).astype(yT_ref.dtype)


def mlp_forward(x, w1, b1, w2, b2, w3, b3, *,
                max_batch_tile=4096, compute_dtype=jnp.float32):
    """x: (B, in_features); weights in PyTorch (out, in) layout, biases (out,)."""
    B, in_features = x.shape
    h1 = w1.shape[0]
    h2 = w2.shape[0]
    out_features = w3.shape[0]

    # Batch on the lane axis.  (Ideally the upstream producer emits x already
    # as (in_features, B); here the transpose+cast is a single fused XLA pass.)
    xT = x.T.astype(compute_dtype)
    w1c = w1.astype(compute_dtype)
    w2c = w2.astype(compute_dtype)
    w3c = w3.astype(compute_dtype)
    # Biases stay f32 (column vectors -> broadcast over the lane/batch axis).
    b1c = b1.reshape(h1, 1).astype(jnp.float32)
    b2c = b2.reshape(h2, 1).astype(jnp.float32)
    b3c = b3.reshape(out_features, 1).astype(jnp.float32)

    # Batch tile: as large as reasonable (multiple of 128) to amortize the
    # per-grid-step overhead; the last tile may be ragged (Pallas masks it).
    if B <= max_batch_tile:
        TB = B                      # single block covering the whole batch
        num_tiles = 1
    else:
        TB = max_batch_tile
        num_tiles = -(-B // TB)
        # v7x megacore: the two TensorCores split the "parallel" axis; nudge
        # the tile down (128-row steps) if that makes the grid length even.
        if num_tiles % 2 == 1:
            for cand in range(TB - 128, max(TB - 8 * 128, 128) - 1, -128):
                n = -(-B // cand)
                if n % 2 == 0:
                    TB, num_tiles = cand, n
                    break

    bytes_per = jnp.dtype(compute_dtype).itemsize
    flops = 2 * B * (in_features * h1 + h1 * h2 + h2 * out_features)
    bytes_accessed = int(
        bytes_per * (B * in_features + in_features * h1 + h1 * h2 + h2 * out_features)
        + 4 * (h1 + h2 + out_features + out_features * B)
    )

    yT = pl.pallas_call(
        mlp_kernel,
        out_shape=jax.ShapeDtypeStruct((out_features, B), jnp.float32),
        grid=(num_tiles,),
        in_specs=[
            # x streams in lane-dense batch tiles; weights/biases use constant
            # index maps -> fetched once, VMEM-resident across the grid.
            pl.BlockSpec((in_features, TB), lambda i: (0, i)),
            pl.BlockSpec((h1, in_features), lambda i: (0, 0)),
            pl.BlockSpec((h1, 1), lambda i: (0, 0)),
            pl.BlockSpec((h2, h1), lambda i: (0, 0)),
            pl.BlockSpec((h2, 1), lambda i: (0, 0)),
            pl.BlockSpec((out_features, h2), lambda i: (0, 0)),
            pl.BlockSpec((out_features, 1), lambda i: (0, 0)),
        ],
        out_specs=pl.BlockSpec((out_features, TB), lambda i: (0, i)),
        compiler_params=pltpu.CompilerParams(
            # Independent batch tiles -> shard grid steps across both
            # TensorCores on v7x; no-op on single-TC v5e/v6e.
            dimension_semantics=("parallel",),
        ),
        cost_estimate=pl.CostEstimate(
            flops=flops, transcendentals=0, bytes_accessed=bytes_accessed),
    )(xT, w1c, b1c, w2c, b2c, w3c, b3c)

    # (out_features, B) -> (B, out_features); trivial for out_features = 1.
    return yT.T


def init_linear(key, in_dim, out_dim):
    # Deterministic PyTorch-style uniform(-1/sqrt(in), 1/sqrt(in)) init,
    # stored in PyTorch layout: weight (out, in), bias (out,).
    kw, kb = jax.random.split(key)
    bound = 1.0 / (in_dim ** 0.5)
    w = jax.random.uniform(kw, (out_dim, in_dim), jnp.float32, -bound, bound)
    b = jax.random.uniform(kb, (out_dim,), jnp.float32, -bound, bound)
    return w, b


def _ref_mlp(x, w1, b1, w2, b2, w3, b3):
    # Full-precision f32 reference (avoids XLA's default bf16 matmul passes).
    hp = jax.lax.Precision.HIGHEST
    h = jnp.maximum(jnp.dot(x, w1.T, precision=hp) + b1, 0.0)
    h = jnp.maximum(jnp.dot(h, w2.T, precision=hp) + b2, 0.0)
    return jnp.dot(h, w3.T, precision=hp) + b3


if __name__ == "__main__":
    in_features, h1, h2, out_features = 9, 64, 32, 1
    batch = 8

    key = jax.random.PRNGKey(0)
    kx, k1, k2, k3, kbig = jax.random.split(key, 5)

    x = jax.random.normal(kx, (batch, in_features), jnp.float32)
    w1, b1 = init_linear(k1, in_features, h1)
    w2, b2 = init_linear(k2, h1, h2)
    w3, b3 = init_linear(k3, h2, out_features)

    # Small-batch path: single grid step, block == full array.
    y = mlp_forward(x, w1, b1, w2, b2, w3, b3)
    jax.block_until_ready(y)
    ref = _ref_mlp(x, w1, b1, w2, b2, w3, b3)
    assert y.shape == (batch, out_features)
    assert jnp.allclose(y, ref, atol=1e-2, rtol=1e-2)

    # Larger-batch path: multi-tile streaming grid with a ragged last tile
    # (no padding pass over x), the even-grid nudge for v7x, and the
    # "parallel" batch axis.  (max_batch_tile lowered so the demo stays small.)
    big_batch = 9001
    xb = jax.random.normal(kbig, (big_batch, in_features), jnp.float32)
    yb = mlp_forward(xb, w1, b1, w2, b2, w3, b3, max_batch_tile=1024)
    jax.block_until_ready(yb)
    refb = _ref_mlp(xb, w1, b1, w2, b2, w3, b3)
    assert yb.shape == (big_batch, out_features)
    assert jnp.allclose(yb, refb, atol=1e-2, rtol=1e-2)

    # bf16 inputs (recommended on v6e/v7x: halves x HBM traffic and VMEM);
    # accumulation and the bias/ReLU epilogue stay f32.
    y16 = mlp_forward(x, w1, b1, w2, b2, w3, b3, compute_dtype=jnp.bfloat16)
    jax.block_until_ready(y16)
    assert jnp.allclose(y16, ref, atol=5e-2, rtol=5e-2)

    print("KERNEL_OK")
</pallas_src>

<mosaic_0001>
module attributes {stable_mosaic.version = 11 : i64} {
  func.func @mlp_kernel(%arg0: i32, %arg1: memref<9x8xf32, #tpu.memory_space<vmem>>, %arg2: memref<64x9xf32, #tpu.memory_space<vmem>>, %arg3: memref<64x1xf32, #tpu.memory_space<vmem>>, %arg4: memref<32x64xf32, #tpu.memory_space<vmem>>, %arg5: memref<32x1xf32, #tpu.memory_space<vmem>>, %arg6: memref<1x32xf32, #tpu.memory_space<vmem>>, %arg7: memref<1x1xf32, #tpu.memory_space<vmem>>, %arg8: memref<1x8xf32, #tpu.memory_space<vmem>>) attributes {dimension_semantics = [#tpu.dimension_semantics<parallel>], iteration_bounds = array<i64: 1>, scalar_prefetch = 0 : i64, scratch_operands = 0 : i64, tpu.core_type = #tpu.core_type<tc>, window_params = [{transform_indices = @transform_0, window_bounds = array<i64: 9, 8>}, {pipeline_mode = #tpu.pipeline_mode<synchronous>, transform_indices = @transform_1, window_bounds = array<i64: 64, 9>}, {pipeline_mode = #tpu.pipeline_mode<synchronous>, transform_indices = @transform_2, window_bounds = array<i64: 64, 1>}, {pipeline_mode = #tpu.pipeline_mode<synchronous>, transform_indices = @transform_3, window_bounds = array<i64: 32, 64>}, {pipeline_mode = #tpu.pipeline_mode<synchronous>, transform_indices = @transform_4, window_bounds = array<i64: 32, 1>}, {pipeline_mode = #tpu.pipeline_mode<synchronous>, transform_indices = @transform_5, window_bounds = array<i64: 1, 32>}, {pipeline_mode = #tpu.pipeline_mode<synchronous>, transform_indices = @transform_6, window_bounds = array<i64: 1, 1>}, {transform_indices = @transform_7, window_bounds = array<i64: 1, 8>}]} {
    %c0 = arith.constant 0 : index
    %c0_0 = arith.constant 0 : index
    %0 = vector.load %arg2[%c0, %c0_0] : memref<64x9xf32, #tpu.memory_space<vmem>>, vector<64x9xf32>
    %c0_1 = arith.constant 0 : index
    %c0_2 = arith.constant 0 : index
    %1 = vector.load %arg1[%c0_1, %c0_2] : memref<9x8xf32, #tpu.memory_space<vmem>>, vector<9x8xf32>
    %cst = arith.constant dense<0.000000e+00> : vector<64x8xf32>
    %2 = tpu.matmul %0, %1, %cst {dimension_numbers = #tpu.dot_dimension_numbers<[1], [0], [0], [1], [0, 0, 1, 1], [], []>} : vector<64x9xf32>, vector<9x8xf32>, vector<64x8xf32> -> vector<64x8xf32>
    %c0_3 = arith.constant 0 : index
    %c0_4 = arith.constant 0 : index
    %3 = vector.load %arg3[%c0_3, %c0_4] : memref<64x1xf32, #tpu.memory_space<vmem>>, vector<64x1xf32>
    %4 = vector.broadcast %3 : vector<64x1xf32> to vector<64x8xf32>
    %5 = arith.addf %2, %4 : vector<64x8xf32>
    %cst_5 = arith.constant 0.000000e+00 : f32
    %6 = vector.broadcast %cst_5 : f32 to vector<64x8xf32>
    %7 = arith.maximumf %5, %6 : vector<64x8xf32>
    %c0_6 = arith.constant 0 : index
    %c0_7 = arith.constant 0 : index
    %8 = vector.load %arg4[%c0_6, %c0_7] : memref<32x64xf32, #tpu.memory_space<vmem>>, vector<32x64xf32>
    %cst_8 = arith.constant dense<0.000000e+00> : vector<32x8xf32>
    %9 = tpu.matmul %8, %7, %cst_8 {dimension_numbers = #tpu.dot_dimension_numbers<[1], [0], [0], [1], [0, 0, 1, 1], [], []>} : vector<32x64xf32>, vector<64x8xf32>, vector<32x8xf32> -> vector<32x8xf32>
    %c0_9 = arith.constant 0 : index
    %c0_10 = arith.constant 0 : index
    %10 = vector.load %arg5[%c0_9, %c0_10] : memref<32x1xf32, #tpu.memory_space<vmem>>, vector<32x1xf32>
    %11 = vector.broadcast %10 : vector<32x1xf32> to vector<32x8xf32>
    %12 = arith.addf %9, %11 : vector<32x8xf32>
    %cst_11 = arith.constant 0.000000e+00 : f32
    %13 = vector.broadcast %cst_11 : f32 to vector<32x8xf32>
    %14 = arith.maximumf %12, %13 : vector<32x8xf32>
    %c0_12 = arith.constant 0 : index
    %c0_13 = arith.constant 0 : index
    %15 = vector.load %arg6[%c0_12, %c0_13] : memref<1x32xf32, #tpu.memory_space<vmem>>, vector<1x32xf32>
    %cst_14 = arith.constant dense<0.000000e+00> : vector<1x8xf32>
    %16 = tpu.matmul %15, %14, %cst_14 {dimension_numbers = #tpu.dot_dimension_numbers<[1], [0], [0], [1], [0, 0, 1, 1], [], []>} : vector<1x32xf32>, vector<32x8xf32>, vector<1x8xf32> -> vector<1x8xf32>
    %c0_15 = arith.constant 0 : index
    %c0_16 = arith.constant 0 : index
    %17 = vector.load %arg7[%c0_15, %c0_16] : memref<1x1xf32, #tpu.memory_space<vmem>>, vector<1x1xf32>
    %18 = vector.broadcast %17 : vector<1x1xf32> to vector<1x8xf32>
    %19 = arith.addf %16, %18 : vector<1x8xf32>
    %c0_17 = arith.constant 0 : index
    %c0_18 = arith.constant 0 : index
    %20 = vector.load %arg8[%c0_17, %c0_18] : memref<1x8xf32, #tpu.memory_space<vmem>>, vector<1x8xf32>
    tpu.vector_store %arg8[%c0_17, %c0_18], %19 {strides = array<i32>} : memref<1x8xf32, #tpu.memory_space<vmem>>, vector<1x8xf32>,
    return
  }
  func.func @transform_0(%arg0: i32) -> (i32, i32) {
    %c0_i32 = arith.constant 0 : i32
    %c0_i32_0 = arith.constant 0 : i32
    return %c0_i32, %arg0 : i32, i32
  }
  func.func @transform_1(%arg0: i32) -> (i32, i32) {
    %c0_i32 = arith.constant 0 : i32
    %c0_i32_0 = arith.constant 0 : i32
    %c0_i32_1 = arith.constant 0 : i32
    return %c0_i32, %c0_i32_0 : i32, i32
  }
  func.func @transform_2(%arg0: i32) -> (i32, i32) {
    %c0_i32 = arith.constant 0 : i32
    %c0_i32_0 = arith.constant 0 : i32
    %c0_i32_1 = arith.constant 0 : i32
    return %c0_i32, %c0_i32_0 : i32, i32
  }
  func.func @transform_3(%arg0: i32) -> (i32, i32) {
    %c0_i32 = arith.constant 0 : i32
    %c0_i32_0 = arith.constant 0 : i32
    %c0_i32_1 = arith.constant 0 : i32
    return %c0_i32, %c0_i32_0 : i32, i32
  }
  func.func @transform_4(%arg0: i32) -> (i32, i32) {
    %c0_i32 = arith.constant 0 : i32
    %c0_i32_0 = arith.constant 0 : i32
    %c0_i32_1 = arith.constant 0 : i32
    return %c0_i32, %c0_i32_0 : i32, i32
  }
  func.func @transform_5(%arg0: i32) -> (i32, i32) {
    %c0_i32 = arith.constant 0 : i32
    %c0_i32_0 = arith.constant 0 : i32
    %c0_i32_1 = arith.constant 0 : i32
    return %c0_i32, %c0_i32_0 : i32, i32
  }
  func.func @transform_6(%arg0: i32) -> (i32, i32) {
    %c0_i32 = arith.constant 0 : i32
    %c0_i32_0 = arith.constant 0 : i32
    %c0_i32_1 = arith.constant 0 : i32
    return %c0_i32, %c0_i32_0 : i32, i32
  }
  func.func @transform_7(%arg0: i32) -> (i32, i32) {
    %c0_i32 = arith.constant 0 : i32
    %c0_i32_0 = arith.constant 0 : i32
    return %c0_i32, %arg0 : i32, i32
  }
}

</mosaic_0001>

<llo_original>
// kernel: tpu_custom_call.1
$region0: #{tpu_custom_call.1}
  #allocation0 [shape = 'u32[]', space=smem, size = 0x4, offset = 0x4, fixed_abs, tag = 'smem constant byte address 0x4 - core index']
  #allocation1 [shape = 'u32[144,128]{1,0:T(1,128)}', space=vmem, size = 0x12000, scoped, tag = 'internal scratch']
  #allocation2 [shape = 'f32[1,1]{1,0:T(1,128)S(1)}', space=vmem, size = 0x200, scoped, tag = 'scoped memory for tpu_custom_call.1']
  %s0 = inlined_call_operand.vmem [shape: f32[9,8], index: 0, kind: input, shape index: {}]
  %s1 = inlined_call_operand.vmem [shape: f32[64,9], index: 1, kind: input, shape index: {}]
  %s2 = inlined_call_operand.vmem [shape: f32[64,1], index: 2, kind: input, shape index: {}]
  %s3 = inlined_call_operand.vmem [shape: f32[32,64], index: 3, kind: input, shape index: {}]
  %s4 = inlined_call_operand.vmem [shape: f32[32,1], index: 4, kind: input, shape index: {}]
  %s5 = inlined_call_operand.vmem [shape: f32[1,32], index: 5, kind: input, shape index: {}]
  %s6 = inlined_call_operand.<no memory space> [shape: f32[1,1], index: 6, kind: input, shape index: {}]
  %s7 = inlined_call_operand.hbm [shape: f32[1,8], index: 7, kind: output, shape index: {}]
  %s8 = sld [smem:[#allocation0]]
  $region38: #{tpu_custom_call.1} parent=0
    _
  %s10 = ssub.s32 1, %s8
  %s11 = scalar_select 0, %s10, %s8
  %v12 = vstv %s6
  %13 = vst [vmem:[#allocation2] sm:$0x1] %v12
  $region1: #{tpu_custom_call.1} parent=0
    #allocation3 [shape = 'u8[512]{0}', space=vmem, size = 0x400, scoped, tag = 'output window, operand 0, single buffered']
    #allocation4 [shape = 's32[1]{0}', space=sflag, size = 0x4, scoped, tag = 'scoped memory for tpu_custom_call.1']
    %14 = vsyncpa [#allocation4], 0
    // Predicated region
    $region2: #{tpu_custom_call.1} parent=1 // pred_check
      _
    $region3: #{tpu_custom_call.1} parent=1 // pred_check_branch
      %16 = sbr.rel (0) target = $region5
    $region4: #{tpu_custom_call.1} parent=1 // pred_region
      _
    $region5: #{tpu_custom_call.1} parent=1 // pred_fallthru
      _
    // Predicated region
    $region6: #{tpu_custom_call.1} parent=1 // pred_check
      _
    $region7: #{tpu_custom_call.1} parent=1 // pred_check_branch
      %18 = sbr.rel (0) target = $region9
    $region8: #{tpu_custom_call.1} parent=1 // pred_region
      _
    $region9: #{tpu_custom_call.1} parent=1 // pred_fallthru
      _
    // Predicated region
    $region10: #{tpu_custom_call.1} parent=1 // pred_check
      _
    $region11: #{tpu_custom_call.1} parent=1 // pred_check_branch
      %20 = sbr.rel (0) target = $region13
    $region12: #{tpu_custom_call.1} parent=1 // pred_region
      _
    $region13: #{tpu_custom_call.1} parent=1 // pred_fallthru
      _
    // Predicated region
    $region14: #{tpu_custom_call.1} parent=1 // pred_check
      _
    $region15: #{tpu_custom_call.1} parent=1 // pred_check_branch
      %22 = sbr.rel (0) target = $region17
    $region16: #{tpu_custom_call.1} parent=1 // pred_region
      _
    $region17: #{tpu_custom_call.1} parent=1 // pred_fallthru
      _
    // Predicated region
    $region18: #{tpu_custom_call.1} parent=1 // pred_check
      _
    $region19: #{tpu_custom_call.1} parent=1 // pred_check_branch
      %24 = sbr.rel (0) target = $region21
    $region20: #{tpu_custom_call.1} parent=1 // pred_region
      _
    $region21: #{tpu_custom_call.1} parent=1 // pred_fallthru
      _
    // Predicated region
    $region22: #{tpu_custom_call.1} parent=1 // pred_check
      _
    $region23: #{tpu_custom_call.1} parent=1 // pred_check_branch
      %26 = sbr.rel (0) target = $region25
    $region24: #{tpu_custom_call.1} parent=1 // pred_region
      _
    $region25: #{tpu_custom_call.1} parent=1 // pred_fallthru
      _
    // Predicated region
    $region26: #{tpu_custom_call.1} parent=1 // pred_check
      _
    $region27: #{tpu_custom_call.1} parent=1 // pred_check_branch
      %28 = sbr.rel (0) target = $region29
    $region28: #{tpu_custom_call.1} parent=1 // pred_region
      _
    $region29: #{tpu_custom_call.1} parent=1 // pred_fallthru
      _
    %v29 = vld [vmem:[%s1] sm:$0xff]
    %v30 = vld [vmem:[%s1 + $0x8] sm:$0xff]
    %v31 = vld [vmem:[%s1 + $0x10] sm:$0xff]
    %v32 = vld [vmem:[%s1 + $0x18] sm:$0xff]
    %v33 = vld [vmem:[%s1 + $0x20] sm:$0xff]
    %v34 = vld [vmem:[%s1 + $0x28] sm:$0xff]
    %v35 = vld [vmem:[%s1 + $0x30] sm:$0xff]
    %v36 = vld [vmem:[%s1 + $0x38] sm:$0xff]
    %v37 = vld [vmem:[%s0] sm:$0xff]
    %v38 = vld [vmem:[%s0 + $0x8] sm:$0x1]
    %v39 = vld [vmem:[%s2] sm:$0xff]
    %v40 = vld [vmem:[%s2 + $0x8] sm:$0xff]
    %v41 = vld [vmem:[%s2 + $0x10] sm:$0xff]
    %v42 = vld [vmem:[%s2 + $0x18] sm:$0xff]
    %v43 = vld [vmem:[%s2 + $0x20] sm:$0xff]
    %v44 = vld [vmem:[%s2 + $0x28] sm:$0xff]
    %v45 = vld [vmem:[%s2 + $0x30] sm:$0xff]
    %v46 = vld [vmem:[%s2 + $0x38] sm:$0xff]
    %48 = vset.pattern.permute.xlu0 0
    %49 = vperm.xlu0 %48, %v39
    %v50 = vpop.permute.xlu0 %49
    %53 = vset.pattern.permute.xlu0 0
    %54 = vperm.xlu0 %53, %v40
    %v55 = vpop.permute.xlu0 %54
    %58 = vset.pattern.permute.xlu0 0
    %59 = vperm.xlu0 %58, %v41
    %v60 = vpop.permute.xlu0 %59
    %63 = vset.pattern.permute.xlu0 0
    %64 = vperm.xlu0 %63, %v42
    %v65 = vpop.permute.xlu0 %64
    %68 = vset.pattern.permute.xlu0 0
    %69 = vperm.xlu0 %68, %v43
    %v70 = vpop.permute.xlu0 %69
    %73 = vset.pattern.permute.xlu0 0
    %74 = vperm.xlu0 %73, %v44
    %v75 = vpop.permute.xlu0 %74
    %78 = vset.pattern.permute.xlu0 0
    %79 = vperm.xlu0 %78, %v45
    %v80 = vpop.permute.xlu0 %79
    %83 = vset.pattern.permute.xlu0 0
    %84 = vperm.xlu0 %83, %v46
    %v85 = vpop.permute.xlu0 %84
    %vm87 = vcmask 72704
    %v89 = vsel %vm87, %v29, 0
    %v92 = vsel %vm87, %v30, 0
    %v95 = vsel %vm87, %v31, 0
    %v98 = vsel %vm87, %v32, 0
    %v101 = vsel %vm87, %v33, 0
    %v104 = vsel %vm87, %v34, 0
    %v107 = vsel %vm87, %v35, 0
    %v110 = vsel %vm87, %v36, 0
    %vm112 = vcmask 1040384
    %v114 = vsel %vm112, %v38, 0
    %116 = vmatprep.subr.mxu0 0.0
    %117 = vmatpush1.msra.mxu0 %v37
    %118 = vmatprep.subr.mxu0 0.0
    %119 = vmatpush1.msra.mxu0 %v114
    %120 = vmatprep.subr.mxu0 0.0
    %121 = vmatpush1.msra.mxu0 0.0
    %122 = vmatprep.subr.mxu0 0.0
    %123 = vmatpush1.msra.mxu0 0.0
    %124 = vmatprep.subr.mxu0 0.0
    %125 = vmatpush1.msra.mxu0 0.0
    %126 = vmatprep.subr.mxu0 0.0
    %127 = vmatpush1.msra.mxu0 0.0
    %128 = vmatprep.subr.mxu0 0.0
    %129 = vmatpush1.msra.mxu0 0.0
    %130 = vmatprep.subr.mxu0 0.0
    %131 = vmatpush1.msra.mxu0 0.0
    %132 = vmatprep.subr.mxu0 0.0
    %133 = vmatpush1.msra.mxu0 0.0
    %134 = vmatprep.subr.mxu0 0.0
    %135 = vmatpush1.msra.mxu0 0.0
    %136 = vmatprep.subr.mxu0 0.0
    %137 = vmatpush1.msra.mxu0 0.0
    %138 = vmatprep.subr.mxu0 0.0
    %139 = vmatpush1.msra.mxu0 0.0
    %140 = vmatprep.subr.mxu0 0.0
    %141 = vmatpush1.msra.mxu0 0.0
    %142 = vmatprep.subr.mxu0 0.0
    %143 = vmatpush1.msra.mxu0 0.0
    %144 = vmatprep.subr.mxu0 0.0
    %145 = vmatpush1.msra.mxu0 0.0
    %146 = vmatprep.subr.mxu0 0.0
    %147 = vmatpush1.msra.mxu0 0.0
    %148 = vmatprep.subr.mxu0 0.0
    %149 = vmatpush1.msra.mxu0 0.0
    %150 = vmatprep.subr.mxu0 0.0
    %151 = vmatpush1.msra.mxu0 0.0
    %152 = vmatprep.subr.mxu0 0.0
    %153 = vmatpush1.msra.mxu0 0.0
    %154 = vmatprep.subr.mxu0 0.0
    %155 = vmatpush1.msra.mxu0 0.0
    %156 = vmatprep.subr.mxu0 0.0
    %157 = vmatpush1.msra.mxu0 0.0
    %158 = vmatprep.subr.mxu0 0.0
    %159 = vmatpush1.msra.mxu0 0.0
    %160 = vmatprep.subr.mxu0 0.0
    %161 = vmatpush1.msra.mxu0 0.0
    %162 = vmatprep.subr.mxu0 0.0
    %163 = vmatpush1.msra.mxu0 0.0
    %164 = vmatprep.subr.mxu0 0.0
    %165 = vmatpush1.msra.mxu0 0.0
    %166 = vmatprep.subr.mxu0 0.0
    %167 = vmatpush1.msra.mxu0 0.0
    %168 = vmatprep.subr.mxu0 0.0
    %169 = vmatpush1.msra.mxu0 0.0
    %170 = vmatprep.subr.mxu0 0.0
    %171 = vmatpush1.msra.mxu0 0.0
    %172 = vmatprep.subr.mxu0 0.0
    %173 = vmatpush1.msra.mxu0 0.0
    %174 = vmatprep.subr.mxu0 0.0
    %175 = vmatpush1.msra.mxu0 0.0
    %176 = vmatprep.subr.mxu0 0.0
    %177 = vmatpush1.msra.mxu0 0.0
    %178 = vmatprep.subr.mxu0 0.0
    %179 = vmatpush1.msra.mxu0 0.0
    %180 = vmatprep.mubr.f32.mxu0 0.0
    %181 = vmatmul.mubr.f32.gmra.mrb[0].mxu0 %v89
    %v182 = vpop.f32.mrb[0].mxu0
    %v183 = vadd.f32 %v50, %v182
    %v184 = vpop.f32.mrb[0].mxu0
    %185 = vmatprep.mubr.f32.mxu0 0.0
    %186 = vmatmul.mubr.f32.gmra.mrb[0].mxu0 %v92
    %v187 = vpop.f32.mrb[0].mxu0
    %v188 = vadd.f32 %v55, %v187
    %v189 = vpop.f32.mrb[0].mxu0
    %190 = vmatprep.mubr.f32.mxu0 0.0
    %191 = vmatmul.mubr.f32.gmra.mrb[0].mxu0 %v95
    %v192 = vpop.f32.mrb[0].mxu0
    %v193 = vadd.f32 %v60, %v192
    %v194 = vpop.f32.mrb[0].mxu0
    %195 = vmatprep.mubr.f32.mxu0 0.0
    %196 = vmatmul.mubr.f32.gmra.mrb[0].mxu0 %v98
    %v197 = vpop.f32.mrb[0].mxu0
    %v198 = vadd.f32 %v65, %v197
    %v199 = vpop.f32.mrb[0].mxu0
    %200 = vmatprep.mubr.f32.mxu0 0.0
    %201 = vmatmul.mubr.f32.gmra.mrb[0].mxu0 %v101
    %v202 = vpop.f32.mrb[0].mxu0
    %v203 = vadd.f32 %v70, %v202
    %v204 = vpop.f32.mrb[0].mxu0
    %205 = vmatprep.mubr.f32.mxu0 0.0
    %206 = vmatmul.mubr.f32.gmra.mrb[0].mxu0 %v104
    %v207 = vpop.f32.mrb[0].mxu0
    %v208 = vadd.f32 %v75, %v207
    %v209 = vpop.f32.mrb[0].mxu0
    %210 = vmatprep.mubr.f32.mxu0 0.0
    %211 = vmatmul.mubr.f32.gmra.mrb[0].mxu0 %v107
    %v212 = vpop.f32.mrb[0].mxu0
    %v213 = vadd.f32 %v80, %v212
    %v214 = vpop.f32.mrb[0].mxu0
    %215 = vmatprep.mubr.f32.mxu0 0.0
    %216 = vmatmul.mubr.f32.gmra.mrb[0].mxu0 %v110
    %v217 = vpop.f32.mrb[0].mxu0
    %v218 = vadd.f32 %v85, %v217
    %v219 = vpop.f32.mrb[0].mxu0
    %220 = vdwg.mxu0
    %v221 = vmax.f32 %v183, 0.0
    %v222 = vmax.f32 %v188, 0.0
    %v223 = vmax.f32 %v193, 0.0
    %v224 = vmax.f32 %v198, 0.0
    %v225 = vmax.f32 %v203, 0.0
    %v226 = vmax.f32 %v208, 0.0
    %v227 = vmax.f32 %v213, 0.0
    %v228 = vmax.f32 %v218, 0.0
    %v229 = vld [vmem:[%s3] sm:$0xff]
    %v230 = vld [vmem:[%s3 + $0x8] sm:$0xff]
    %v231 = vld [vmem:[%s3 + $0x10] sm:$0xff]
    %v232 = vld [vmem:[%s3 + $0x18] sm:$0xff]
    %v233 = vld [vmem:[%s4] sm:$0xff]
    %v234 = vld [vmem:[%s4 + $0x8] sm:$0xff]
    %v235 = vld [vmem:[%s4 + $0x10] sm:$0xff]
    %v236 = vld [vmem:[%s4 + $0x18] sm:$0xff]
    %238 = vset.pattern.permute.xlu0 0
    %239 = vperm.xlu0 %238, %v233
    %v240 = vpop.permute.xlu0 %239
    %243 = vset.pattern.permute.xlu0 0
    %244 = vperm.xlu0 %243, %v234
    %v245 = vpop.permute.xlu0 %244
    %248 = vset.pattern.permute.xlu0 0
    %249 = vperm.xlu0 %248, %v235
    %v250 = vpop.permute.xlu0 %249
    %253 = vset.pattern.permute.xlu0 0
    %254 = vperm.xlu0 %253, %v236
    %v255 = vpop.permute.xlu0 %254
    %vm257 = vcmask 523264
    %v259 = vsel %vm257, %v229, 0
    %v262 = vsel %vm257, %v230, 0
    %v265 = vsel %vm257, %v231, 0
    %v268 = vsel %vm257, %v232, 0
    %270 = vmatprep.subr.mxu0 0.0
    %271 = vmatpush1.msra.mxu0 %v221
    %272 = vmatprep.subr.mxu0 0.0
    %273 = vmatpush1.msra.mxu0 %v222
    %274 = vmatprep.subr.mxu0 0.0
    %275 = vmatpush1.msra.mxu0 %v223
    %276 = vmatprep.subr.mxu0 0.0
    %277 = vmatpush1.msra.mxu0 %v224
    %278 = vmatprep.subr.mxu0 0.0
    %279 = vmatpush1.msra.mxu0 %v225
    %280 = vmatprep.subr.mxu0 0.0
    %281 = vmatpush1.msra.mxu0 %v226
    %282 = vmatprep.subr.mxu0 0.0
    %283 = vmatpush1.msra.mxu0 %v227
    %284 = vmatprep.subr.mxu0 0.0
    %285 = vmatpush1.msra.mxu0 %v228
    %286 = vmatprep.subr.mxu0 0.0
    %287 = vmatpush1.msra.mxu0 0.0
    %288 = vmatprep.subr.mxu0 0.0
    %289 = vmatpush1.msra.mxu0 0.0
    %290 = vmatprep.subr.mxu0 0.0
    %291 = vmatpush1.msra.mxu0 0.0
    %292 = vmatprep.subr.mxu0 0.0
    %293 = vmatpush1.msra.mxu0 0.0
    %294 = vmatprep.subr.mxu0 0.0
    %295 = vmatpush1.msra.mxu0 0.0
    %296 = vmatprep.subr.mxu0 0.0
    %297 = vmatpush1.msra.mxu0 0.0
    %298 = vmatprep.subr.mxu0 0.0
    %299 = vmatpush1.msra.mxu0 0.0
    %300 = vmatprep.subr.mxu0 0.0
    %301 = vmatpush1.msra.mxu0 0.0
    %302 = vmatprep.subr.mxu0 0.0
    %303 = vmatpush1.msra.mxu0 0.0
    %304 = vmatprep.subr.mxu0 0.0
    %305 = vmatpush1.msra.mxu0 0.0
    %306 = vmatprep.subr.mxu0 0.0
    %307 = vmatpush1.msra.mxu0 0.0
    %308 = vmatprep.subr.mxu0 0.0
    %309 = vmatpush1.msra.mxu0 0.0
    %310 = vmatprep.subr.mxu0 0.0
    %311 = vmatpush1.msra.mxu0 0.0
    %312 = vmatprep.subr.mxu0 0.0
    %313 = vmatpush1.msra.mxu0 0.0
    %314 = vmatprep.subr.mxu0 0.0
    %315 = vmatpush1.msra.mxu0 0.0
    %316 = vmatprep.subr.mxu0 0.0
    %317 = vmatpush1.msra.mxu0 0.0
    %318 = vmatprep.subr.mxu0 0.0
    %319 = vmatpush1.msra.mxu0 0.0
    %320 = vmatprep.subr.mxu0 0.0
    %321 = vmatpush1.msra.mxu0 0.0
    %322 = vmatprep.subr.mxu0 0.0
    %323 = vmatpush1.msra.mxu0 0.0
    %324 = vmatprep.subr.mxu0 0.0
    %325 = vmatpush1.msra.mxu0 0.0
    %326 = vmatprep.subr.mxu0 0.0
    %327 = vmatpush1.msra.mxu0 0.0
    %328 = vmatprep.subr.mxu0 0.0
    %329 = vmatpush1.msra.mxu0 0.0
    %330 = vmatprep.subr.mxu0 0.0
    %331 = vmatpush1.msra.mxu0 0.0
    %332 = vmatprep.subr.mxu0 0.0
    %333 = vmatpush1.msra.mxu0 0.0
    %334 = vmatprep.mubr.f32.mxu0 0.0
    %335 = vmatmul.mubr.f32.gmra.mrb[0].mxu0 %v259
    %v336 = vpop.f32.mrb[0].mxu0
    %v337 = vadd.f32 %v240, %v336
    %v338 = vpop.f32.mrb[0].mxu0
    %339 = vmatprep.mubr.f32.mxu0 0.0
    %340 = vmatmul.mubr.f32.gmra.mrb[0].mxu0 %v262
    %v341 = vpop.f32.mrb[0].mxu0
    %v342 = vadd.f32 %v245, %v341
    %v343 = vpop.f32.mrb[0].mxu0
    %344 = vmatprep.mubr.f32.mxu0 0.0
    %345 = vmatmul.mubr.f32.gmra.mrb[0].mxu0 %v265
    %v346 = vpop.f32.mrb[0].mxu0
    %v347 = vadd.f32 %v250, %v346
    %v348 = vpop.f32.mrb[0].mxu0
    %349 = vmatprep.mubr.f32.mxu0 0.0
    %350 = vmatmul.mubr.f32.gmra.mrb[0].mxu0 %v268
    %v351 = vpop.f32.mrb[0].mxu0
    %v352 = vadd.f32 %v255, %v351
    %v353 = vpop.f32.mrb[0].mxu0
    %354 = vdwg.mxu0
    %v355 = vmax.f32 %v337, 0.0
    %v356 = vmax.f32 %v342, 0.0
    %v357 = vmax.f32 %v347, 0.0
    %v358 = vmax.f32 %v352, 0.0
    %v359 = vld [vmem:[%s5] sm:$0x1]
    %v360 = vld [vmem:[#allocation2] sm:$0x1]
    %362 = vset.pattern.permute.xlu0 0
    %363 = vperm.xlu0 %362, %v360
    %v364 = vpop.permute.xlu0 %363
    %v366 = vlaneseq
    %v367 = vshrl.u32 %v366, 7
    %v368 = vsub.s32 0, %v367
    %v369 = vrot.slane %v364, %v368
    %vm370 = vcmask 261120
    %v372 = vsel %vm370, %v359, 0
    %374 = vmatprep.subr.mxu0 0.0
    %375 = vmatpush1.msra.mxu0 %v355
    %376 = vmatprep.subr.mxu0 0.0
    %377 = vmatpush1.msra.mxu0 %v356
    %378 = vmatprep.subr.mxu0 0.0
    %379 = vmatpush1.msra.mxu0 %v357
    %380 = vmatprep.subr.mxu0 0.0
    %381 = vmatpush1.msra.mxu0 %v358
    %382 = vmatprep.subr.mxu0 0.0
    %383 = vmatpush1.msra.mxu0 0.0
    %384 = vmatprep.subr.mxu0 0.0
    %385 = vmatpush1.msra.mxu0 0.0
    %386 = vmatprep.subr.mxu0 0.0
    %387 = vmatpush1.msra.mxu0 0.0
    %388 = vmatprep.subr.mxu0 0.0
    %389 = vmatpush1.msra.mxu0 0.0
    %390 = vmatprep.subr.mxu0 0.0
    %391 = vmatpush1.msra.mxu0 0.0
    %392 = vmatprep.subr.mxu0 0.0
    %393 = vmatpush1.msra.mxu0 0.0
    %394 = vmatprep.subr.mxu0 0.0
    %395 = vmatpush1.msra.mxu0 0.0
    %396 = vmatprep.subr.mxu0 0.0
    %397 = vmatpush1.msra.mxu0 0.0
    %398 = vmatprep.subr.mxu0 0.0
    %399 = vmatpush1.msra.mxu0 0.0
    %400 = vmatprep.subr.mxu0 0.0
    %401 = vmatpush1.msra.mxu0 0.0
    %402 = vmatprep.subr.mxu0 0.0
    %403 = vmatpush1.msra.mxu0 0.0
    %404 = vmatprep.subr.mxu0 0.0
    %405 = vmatpush1.msra.mxu0 0.0
    %406 = vmatprep.subr.mxu0 0.0
    %407 = vmatpush1.msra.mxu0 0.0
    %408 = vmatprep.subr.mxu0 0.0
    %409 = vmatpush1.msra.mxu0 0.0
    %410 = vmatprep.subr.mxu0 0.0
    %411 = vmatpush1.msra.mxu0 0.0
    %412 = vmatprep.subr.mxu0 0.0
    %413 = vmatpush1.msra.mxu0 0.0
    %414 = vmatprep.subr.mxu0 0.0
    %415 = vmatpush1.msra.mxu0 0.0
    %416 = vmatprep.subr.mxu0 0.0
    %417 = vmatpush1.msra.mxu0 0.0
    %418 = vmatprep.subr.mxu0 0.0
    %419 = vmatpush1.msra.mxu0 0.0
    %420 = vmatprep.subr.mxu0 0.0
    %421 = vmatpush1.msra.mxu0 0.0
    %422 = vmatprep.subr.mxu0 0.0
    %423 = vmatpush1.msra.mxu0 0.0
    %424 = vmatprep.subr.mxu0 0.0
    %425 = vmatpush1.msra.mxu0 0.0
    %426 = vmatprep.subr.mxu0 0.0
    %427 = vmatpush1.msra.mxu0 0.0
    %428 = vmatprep.subr.mxu0 0.0
    %429 = vmatpush1.msra.mxu0 0.0
    %430 = vmatprep.subr.mxu0 0.0
    %431 = vmatpush1.msra.mxu0 0.0
    %432 = vmatprep.subr.mxu0 0.0
    %433 = vmatpush1.msra.mxu0 0.0
    %434 = vmatprep.subr.mxu0 0.0
    %435 = vmatpush1.msra.mxu0 0.0
    %436 = vmatprep.subr.mxu0 0.0
    %437 = vmatpush1.msra.mxu0 0.0
    %438 = vmatprep.mubr.f32.mxu0 0.0
    %439 = vmatmul.mubr.f32.gmra.mrb[0].mxu0 %v372
    %v440 = vpop.f32.mrb[0].mxu0
    %v441 = vadd.f32 %v369, %v440
    %v442 = vpop.f32.mrb[0].mxu0
    %443 = vdwg.mxu0
    %vm444 = vcmask 57344
    %445 = vst.msk [vmem:[#allocation3] sm:$0x1] %vm444, %v441
    // Predicated region
    $region30: #{tpu_custom_call.1} parent=1 // pred_check
      _
    $region31: #{tpu_custom_call.1} parent=1 // pred_check_branch
      %447 = sbr.rel (0) target = $region33
    $region32: #{tpu_custom_call.1} parent=1 // pred_region
      %s449 = ssub.s32 16, 16
      %450 = vsyncadd [#allocation4], %s449
      %s452 = sshll.u32 [#allocation3], 4
      %s453 = int_to_ptr.vmem [resolvable:$true] %s452
      %455 = dma.vmem_to_hbm [thread:$0]  %s453, 16, %s7, [#allocation4]
    $region33: #{tpu_custom_call.1} parent=1 // pred_fallthru
      _
    // Predicated region
    $region34: #{tpu_custom_call.1} parent=1 // pred_check
      _
    $region35: #{tpu_custom_call.1} parent=1 // pred_check_branch
      %457 = sbr.rel (0) target = $region37
    $region36: #{tpu_custom_call.1} parent=1 // pred_region
      %458 = dma.done [#allocation4], 16
    $region37: #{tpu_custom_call.1} parent=1 // pred_fallthru
      _
    %459 = vsyncpa [#allocation4], 1

</llo_original>
